<compile_context>
chip_gen: v6e
topology: v6e:2x2x1
jax: 0.10.0
libtpu: 0.0.40
codegen_flags: <defaults>
</compile_context>

<pallas_src>
import functools

import jax
import jax.numpy as jnp
from jax.experimental import pallas as pl
from jax.experimental.pallas import tpu as pltpu


def _magnet_kernel(r_ref, cls_ref, ccls_ref, cidx_ref,
                   total_ref, losses_ref, pred_ref, acc_ref,
                   *, d, alpha):
    N = cls_ref.shape[1]
    m = ccls_ref.shape[0]
    D = r_ref.shape[1]

    # Cast after the DMA: HBM traffic stays in the native dtype (bf16 ok).
    r = r_ref[...].astype(jnp.float32)        # (N, D)
    classes = cls_ref[...]                    # (1, N) f32 class label per row
    cluster_classes = ccls_ref[...]           # (m, 1) f32 class label per cluster
    cluster_idx = cidx_ref[...]               # (1, N) i32 cluster index per row

    # ---- cluster means via MXU: assign01[c, i] = (row i belongs to cluster c)
    # (also reused as the intra-cluster mask; no integer division anywhere)
    row_mN = jax.lax.broadcasted_iota(jnp.int32, (m, N), 0)
    intra_mask = (cluster_idx == row_mN)                       # (m, N) bool
    assign01 = intra_mask.astype(jnp.float32)                  # (m, N)
    means = jnp.dot(assign01, r,
                    preferred_element_type=jnp.float32) * (1.0 / d)   # (m, D)

    # ---- squared Euclidean distances, lane-major: (m, N) ----
    # ||mu||^2 : cheap XLU lane-reduce over the tiny (m, D) means buffer.
    m_sq = jnp.sum(means * means, axis=1, keepdims=True)       # (m, 1)
    # ||r||^2 : produced directly as a (1, N) lane-major row via the MXU
    # (avoids an (N,1) -> (1,N) cross-layout transpose).
    rr = r * r
    r_sq = jax.lax.dot_general(                                 # (1, N)
        jnp.ones((1, D), jnp.float32), rr,
        (((1,), (1,)), ((), ())), preferred_element_type=jnp.float32)
    cross = jax.lax.dot_general(                                # (m, N)
        means, r, (((1,), (1,)), ((), ())),
        preferred_element_type=jnp.float32)
    sample_costs = m_sq + r_sq - 2.0 * cross                    # (m, N)

    # ---- intra-cluster costs & variance ----
    intra_costs = jnp.sum(assign01 * sample_costs, axis=0,
                          keepdims=True)                        # (1, N)

    # NOTE: like the PyTorch reference, variance is not clamped; if every
    # sample coincides with its cluster mean this produces NaNs (same as ref).
    variance = jnp.sum(intra_costs, keepdims=True) / (N - 1.0)  # (1, 1)
    var_norm = -1.0 / (2.0 * variance * variance)               # (1, 1)

    numerator = jnp.exp(var_norm * intra_costs - alpha)         # (1, N)

    diff_class_mask = 1.0 - (cluster_classes == classes).astype(jnp.float32)
    denom_costs = jnp.exp(var_norm * sample_costs)              # (m, N)
    denominator = jnp.sum(diff_class_mask * denom_costs, axis=0,
                          keepdims=True)                        # (1, N)

    eps = 1e-8
    losses = jnp.maximum(-jnp.log(numerator / (denominator + eps) + eps), 0.0)

    losses_ref[...] = losses                                    # lane-dense store
    # Scalar result -> SMEM (scalar store; no masked vector store / tiny DMA).
    total_ref[0] = jnp.sum(losses) * (1.0 / N)

    # ---- 'closest' prediction: fused argmin over the m sublane rows ----
    # Unrolled compare/select sweep (m is small); first index wins on ties.
    best_cost = sample_costs[0:1, :]                            # (1, N)
    best_idx = jnp.zeros((1, N), jnp.int32)
    for c in range(1, m):
        cost_c = sample_costs[c:c + 1, :]
        better = cost_c < best_cost
        best_cost = jnp.where(better, cost_c, best_cost)
        best_idx = jnp.where(better, jnp.int32(c), best_idx)
    pred_ref[...] = best_idx                                    # lane-dense store

    correct = (best_idx == cluster_idx).astype(jnp.float32)     # (1, N)
    acc_ref[0] = jnp.sum(correct) * (1.0 / N)


def magnet_loss(r, target, *, m, d, alpha=1.0):
    """r: (N, D) features (any float dtype), target: (N,) int labels, N = m*d."""
    N, D = r.shape
    assert N == m * d, "batch must be m clusters of d examples"

    # Glue done in plain JAX (mirrors the torch module's label plumbing).
    classes_f = target.astype(jnp.float32).reshape(1, N)
    cluster_classes_f = target[0:m * d:d].astype(jnp.float32).reshape(m, 1)
    cluster_idx = (jnp.arange(N, dtype=jnp.int32) // d).reshape(1, N)

    kernel = functools.partial(_magnet_kernel, d=d, alpha=alpha)

    out_shape = (
        jax.ShapeDtypeStruct((1,), jnp.float32),     # total_loss (SMEM scalar)
        jax.ShapeDtypeStruct((1, N), jnp.float32),   # losses (lane-dense)
        jax.ShapeDtypeStruct((1, N), jnp.int32),     # pred   (lane-dense)
        jax.ShapeDtypeStruct((1,), jnp.float32),     # acc (SMEM scalar)
    )

    # Single-block kernel: for magnet-loss batch sizes (N = m*d, m ~ 4..32,
    # d ~ 8..64) everything comfortably fits one VMEM block on v5e/v6e/v7x.
    # TODO(synk): for large N*D, restructure into a two-pass N-tiled pipeline
    # (pass 1 accumulates means/variance, pass 2 does the distance/exp phase
    # with a "parallel" N axis for v7x's 2 TCs and tiles re-sized for its
    # 64 MiB VMEM).
    total, losses, pred, acc = pl.pallas_call(
        kernel,
        out_shape=out_shape,
        grid=(1,),
        in_specs=[
            pl.BlockSpec((N, D), lambda i: (0, 0)),   # r, native dtype
            pl.BlockSpec((1, N), lambda i: (0, 0)),   # classes (lane-major)
            pl.BlockSpec((m, 1), lambda i: (0, 0)),   # cluster classes
            pl.BlockSpec((1, N), lambda i: (0, 0)),   # per-row cluster index
        ],
        out_specs=(
            pl.BlockSpec(memory_space=pltpu.MemorySpace.SMEM),   # total_loss
            pl.BlockSpec((1, N), lambda i: (0, 0)),              # losses
            pl.BlockSpec((1, N), lambda i: (0, 0)),              # pred
            pl.BlockSpec(memory_space=pltpu.MemorySpace.SMEM),   # acc
        ),
        compiler_params=pltpu.CompilerParams(
            dimension_semantics=("arbitrary",)),
    )(r, classes_f, cluster_classes_f, cluster_idx)

    # TODO(synk): the running self.variances concat (host-side stateful
    # bookkeeping in the nn.Module) is not replicated.
    return total[0], losses[0, :], pred[0, :], acc[0]


if __name__ == "__main__":
    m, d, D = 8, 16, 64          # 8 clusters x 16 examples/cluster, 64-d features
    N = m * d
    key = jax.random.PRNGKey(0)
    r = jax.random.normal(key, (N, D), dtype=jnp.float32)
    # class labels consistent with magnet sampling: each cluster has one class
    target = (jnp.arange(N, dtype=jnp.int32) // d) % 2

    total_loss, losses, pred, acc = magnet_loss(r, target, m=m, d=d, alpha=1.0)
    jax.block_until_ready((total_loss, losses, pred, acc))
    print("KERNEL_OK")
</pallas_src>

<mosaic_0001>
module attributes {stable_mosaic.version = 11 : i64} {
  func.func @_magnet_kernel(%arg0: i32, %arg1: memref<128x64xf32, #tpu.memory_space<vmem>>, %arg2: memref<1x128xf32, #tpu.memory_space<vmem>>, %arg3: memref<8x1xf32, #tpu.memory_space<vmem>>, %arg4: memref<1x128xi32, #tpu.memory_space<vmem>>, %arg5: memref<1xf32, #tpu.memory_space<smem>>, %arg6: memref<1x128xf32, #tpu.memory_space<vmem>>, %arg7: memref<1x128xi32, #tpu.memory_space<vmem>>, %arg8: memref<1xf32, #tpu.memory_space<smem>>) attributes {dimension_semantics = [#tpu.dimension_semantics<arbitrary>], iteration_bounds = array<i64: 1>, scalar_prefetch = 0 : i64, scratch_operands = 0 : i64, tpu.core_type = #tpu.core_type<tc>, window_params = [{pipeline_mode = #tpu.pipeline_mode<synchronous>, transform_indices = @transform_0, window_bounds = array<i64: 128, 64>}, {pipeline_mode = #tpu.pipeline_mode<synchronous>, transform_indices = @transform_1, window_bounds = array<i64: 1, 128>}, {pipeline_mode = #tpu.pipeline_mode<synchronous>, transform_indices = @transform_2, window_bounds = array<i64: 8, 1>}, {pipeline_mode = #tpu.pipeline_mode<synchronous>, transform_indices = @transform_3, window_bounds = array<i64: 1, 128>}, {transform_indices = @transform_4, window_bounds = array<i64: 1>}, {pipeline_mode = #tpu.pipeline_mode<synchronous>, transform_indices = @transform_5, window_bounds = array<i64: 1, 128>}, {pipeline_mode = #tpu.pipeline_mode<synchronous>, transform_indices = @transform_6, window_bounds = array<i64: 1, 128>}, {transform_indices = @transform_7, window_bounds = array<i64: 1>}]} {
    %c0 = arith.constant 0 : index
    %c0_0 = arith.constant 0 : index
    %0 = vector.load %arg1[%c0, %c0_0] : memref<128x64xf32, #tpu.memory_space<vmem>>, vector<128x64xf32>
    %c0_1 = arith.constant 0 : index
    %c0_2 = arith.constant 0 : index
    %1 = vector.load %arg2[%c0_1, %c0_2] : memref<1x128xf32, #tpu.memory_space<vmem>>, vector<1x128xf32>
    %c0_3 = arith.constant 0 : index
    %c0_4 = arith.constant 0 : index
    %2 = vector.load %arg3[%c0_3, %c0_4] : memref<8x1xf32, #tpu.memory_space<vmem>>, vector<8x1xf32>
    %c0_5 = arith.constant 0 : index
    %c0_6 = arith.constant 0 : index
    %3 = vector.load %arg4[%c0_5, %c0_6] : memref<1x128xi32, #tpu.memory_space<vmem>>, vector<1x128xi32>
    %4 = tpu.iota {dimensions = array<i32: 0>} : vector<8x128xi32>
    %5 = vector.broadcast %3 : vector<1x128xi32> to vector<8x128xi32>
    %6 = arith.cmpi eq, %5, %4 : vector<8x128xi32>
    %7 = arith.extui %6 : vector<8x128xi1> to vector<8x128xi32>
    %8 = arith.sitofp %7 : vector<8x128xi32> to vector<8x128xf32>
    %cst = arith.constant dense<0.000000e+00> : vector<8x64xf32>
    %9 = tpu.matmul %8, %0, %cst {dimension_numbers = #tpu.dot_dimension_numbers<[1], [0], [0], [1], [0, 0, 1, 1], [], []>} : vector<8x128xf32>, vector<128x64xf32>, vector<8x64xf32> -> vector<8x64xf32>
    %cst_7 = arith.constant 6.250000e-02 : f32
    %10 = vector.broadcast %cst_7 : f32 to vector<8x64xf32>
    %11 = arith.mulf %9, %10 : vector<8x64xf32>
    %12 = arith.mulf %11, %11 : vector<8x64xf32>
    %cst_8 = arith.constant dense<0.000000e+00> : vector<8xf32>
    %13 = vector.multi_reduction <add>, %12, %cst_8 [1] : vector<8x64xf32> to vector<8xf32>
    %14 = vector.shape_cast %13 : vector<8xf32> to vector<8x1xf32>
    %15 = arith.mulf %0, %0 : vector<128x64xf32>
    %cst_9 = arith.constant 1.000000e+00 : f32
    %16 = vector.broadcast %cst_9 : f32 to vector<1x64xf32>
    %cst_10 = arith.constant dense<0.000000e+00> : vector<1x128xf32>
    %17 = tpu.matmul %16, %15, %cst_10 {dimension_numbers = #tpu.dot_dimension_numbers<[1], [1], [0], [0], [0, 0, 1, 0], [], []>} : vector<1x64xf32>, vector<128x64xf32>, vector<1x128xf32> -> vector<1x128xf32>
    %cst_11 = arith.constant dense<0.000000e+00> : vector<8x128xf32>
    %18 = tpu.matmul %11, %0, %cst_11 {dimension_numbers = #tpu.dot_dimension_numbers<[1], [1], [0], [0], [0, 0, 1, 0], [], []>} : vector<8x64xf32>, vector<128x64xf32>, vector<8x128xf32> -> vector<8x128xf32>
    %19 = vector.broadcast %14 : vector<8x1xf32> to vector<8x128xf32>
    %20 = vector.broadcast %17 : vector<1x128xf32> to vector<8x128xf32>
    %21 = arith.addf %19, %20 : vector<8x128xf32>
    %cst_12 = arith.constant 2.000000e+00 : f32
    %22 = vector.broadcast %cst_12 : f32 to vector<8x128xf32>
    %23 = arith.mulf %22, %18 : vector<8x128xf32>
    %24 = arith.subf %21, %23 : vector<8x128xf32>
    %25 = arith.mulf %8, %24 : vector<8x128xf32>
    %cst_13 = arith.constant dense<0.000000e+00> : vector<128xf32>
    %26 = vector.multi_reduction <add>, %25, %cst_13 [0] : vector<8x128xf32> to vector<128xf32>
    %27 = vector.shape_cast %26 : vector<128xf32> to vector<1x128xf32>
    %28 = vector.shape_cast %27 : vector<1x128xf32> to vector<1x1x128xf32>
    %cst_14 = arith.constant dense<0.000000e+00> : vector<1xf32>
    %29 = vector.multi_reduction <add>, %28, %cst_14 [1, 2] : vector<1x1x128xf32> to vector<1xf32>
    %30 = vector.shape_cast %29 : vector<1xf32> to vector<1x1x1xf32>
    %31 = vector.extract %30[0, 0, 0] : f32 from vector<1x1x1xf32>
    %32 = vector.broadcast %31 : f32 to vector<1x1xf32>
    %cst_15 = arith.constant 1.270000e+02 : f32
    %33 = vector.broadcast %cst_15 : f32 to vector<1x1xf32>
    %34 = arith.divf %32, %33 : vector<1x1xf32>
    %cst_16 = arith.constant 2.000000e+00 : f32
    %35 = vector.broadcast %cst_16 : f32 to vector<1x1xf32>
    %36 = arith.mulf %35, %34 : vector<1x1xf32>
    %37 = arith.mulf %36, %34 : vector<1x1xf32>
    %cst_17 = arith.constant -1.000000e+00 : f32
    %38 = vector.broadcast %cst_17 : f32 to vector<1x1xf32>
    %39 = arith.divf %38, %37 : vector<1x1xf32>
    %40 = vector.broadcast %39 : vector<1x1xf32> to vector<1x128xf32>
    %41 = arith.mulf %40, %27 : vector<1x128xf32>
    %cst_18 = arith.constant 1.000000e+00 : f32
    %42 = vector.broadcast %cst_18 : f32 to vector<1x128xf32>
    %43 = arith.subf %41, %42 : vector<1x128xf32>
    %44 = math.exp %43 : vector<1x128xf32>
    %45 = vector.broadcast %2 : vector<8x1xf32> to vector<8x128xf32>
    %46 = vector.broadcast %1 : vector<1x128xf32> to vector<8x128xf32>
    %47 = arith.cmpf oeq, %45, %46 : vector<8x128xf32>
    %48 = arith.extui %47 : vector<8x128xi1> to vector<8x128xi32>
    %49 = arith.sitofp %48 : vector<8x128xi32> to vector<8x128xf32>
    %cst_19 = arith.constant 1.000000e+00 : f32
    %50 = vector.broadcast %cst_19 : f32 to vector<8x128xf32>
    %51 = arith.subf %50, %49 : vector<8x128xf32>
    %52 = vector.broadcast %39 : vector<1x1xf32> to vector<8x128xf32>
    %53 = arith.mulf %52, %24 : vector<8x128xf32>
    %54 = math.exp %53 : vector<8x128xf32>
    %55 = arith.mulf %51, %54 : vector<8x128xf32>
    %cst_20 = arith.constant dense<0.000000e+00> : vector<128xf32>
    %56 = vector.multi_reduction <add>, %55, %cst_20 [0] : vector<8x128xf32> to vector<128xf32>
    %57 = vector.shape_cast %56 : vector<128xf32> to vector<1x128xf32>
    %cst_21 = arith.constant 9.99999993E-9 : f32
    %58 = vector.broadcast %cst_21 : f32 to vector<1x128xf32>
    %59 = arith.addf %57, %58 : vector<1x128xf32>
    %60 = arith.divf %44, %59 : vector<1x128xf32>
    %cst_22 = arith.constant 9.99999993E-9 : f32
    %61 = vector.broadcast %cst_22 : f32 to vector<1x128xf32>
    %62 = arith.addf %60, %61 : vector<1x128xf32>
    %63 = math.log %62 : vector<1x128xf32>
    %cst_23 = arith.constant 0.000000e+00 : f32
    %64 = vector.broadcast %cst_23 : f32 to vector<1x128xf32>
    %65 = arith.subf %64, %63 : vector<1x128xf32>
    %cst_24 = arith.constant 0.000000e+00 : f32
    %66 = vector.broadcast %cst_24 : f32 to vector<1x128xf32>
    %67 = arith.maximumf %65, %66 : vector<1x128xf32>
    %c0_25 = arith.constant 0 : index
    %c0_26 = arith.constant 0 : index
    %68 = vector.load %arg6[%c0_25, %c0_26] : memref<1x128xf32, #tpu.memory_space<vmem>>, vector<1x128xf32>
    tpu.vector_store %arg6[%c0_25, %c0_26], %67 {strides = array<i32>} : memref<1x128xf32, #tpu.memory_space<vmem>>, vector<1x128xf32>,
    %69 = vector.shape_cast %67 : vector<1x128xf32> to vector<1x1x128xf32>
    %cst_27 = arith.constant dense<0.000000e+00> : vector<1xf32>
    %70 = vector.multi_reduction <add>, %69, %cst_27 [1, 2] : vector<1x1x128xf32> to vector<1xf32>
    %71 = vector.shape_cast %70 : vector<1xf32> to vector<1x1x1xf32>
    %72 = vector.extract %71[0, 0, 0] : f32 from vector<1x1x1xf32>
    %cst_28 = arith.constant 7.812500e-03 : f32
    %73 = arith.mulf %72, %cst_28 : f32
    %c0_29 = arith.constant 0 : index
    %74 = memref.load %arg5[%c0_29] : memref<1xf32, #tpu.memory_space<smem>>
    memref.store %73, %arg5[%c0_29] : memref<1xf32, #tpu.memory_space<smem>>
    %75 = vector.extract_strided_slice %24 {offsets = [0, 0], sizes = [1, 128], strides = [1, 1]} : vector<8x128xf32> to vector<1x128xf32>
    %c0_i32 = arith.constant 0 : i32
    %76 = vector.broadcast %c0_i32 : i32 to vector<1x128xi32>
    %77 = vector.extract_strided_slice %24 {offsets = [1, 0], sizes = [1, 128], strides = [1, 1]} : vector<8x128xf32> to vector<1x128xf32>
    %78 = arith.cmpf olt, %77, %75 : vector<1x128xf32>
    %79 = arith.select %78, %77, %75 : vector<1x128xi1>, vector<1x128xf32>
    %c1_i32 = arith.constant 1 : i32
    %80 = vector.broadcast %c1_i32 : i32 to vector<1x128xi32>
    %81 = arith.select %78, %80, %76 : vector<1x128xi1>, vector<1x128xi32>
    %82 = vector.extract_strided_slice %24 {offsets = [2, 0], sizes = [1, 128], strides = [1, 1]} : vector<8x128xf32> to vector<1x128xf32>
    %83 = arith.cmpf olt, %82, %79 : vector<1x128xf32>
    %84 = arith.select %83, %82, %79 : vector<1x128xi1>, vector<1x128xf32>
    %c2_i32 = arith.constant 2 : i32
    %85 = vector.broadcast %c2_i32 : i32 to vector<1x128xi32>
    %86 = arith.select %83, %85, %81 : vector<1x128xi1>, vector<1x128xi32>
    %87 = vector.extract_strided_slice %24 {offsets = [3, 0], sizes = [1, 128], strides = [1, 1]} : vector<8x128xf32> to vector<1x128xf32>
    %88 = arith.cmpf olt, %87, %84 : vector<1x128xf32>
    %89 = arith.select %88, %87, %84 : vector<1x128xi1>, vector<1x128xf32>
    %c3_i32 = arith.constant 3 : i32
    %90 = vector.broadcast %c3_i32 : i32 to vector<1x128xi32>
    %91 = arith.select %88, %90, %86 : vector<1x128xi1>, vector<1x128xi32>
    %92 = vector.extract_strided_slice %24 {offsets = [4, 0], sizes = [1, 128], strides = [1, 1]} : vector<8x128xf32> to vector<1x128xf32>
    %93 = arith.cmpf olt, %92, %89 : vector<1x128xf32>
    %94 = arith.select %93, %92, %89 : vector<1x128xi1>, vector<1x128xf32>
    %c4_i32 = arith.constant 4 : i32
    %95 = vector.broadcast %c4_i32 : i32 to vector<1x128xi32>
    %96 = arith.select %93, %95, %91 : vector<1x128xi1>, vector<1x128xi32>
    %97 = vector.extract_strided_slice %24 {offsets = [5, 0], sizes = [1, 128], strides = [1, 1]} : vector<8x128xf32> to vector<1x128xf32>
    %98 = arith.cmpf olt, %97, %94 : vector<1x128xf32>
    %99 = arith.select %98, %97, %94 : vector<1x128xi1>, vector<1x128xf32>
    %c5_i32 = arith.constant 5 : i32
    %100 = vector.broadcast %c5_i32 : i32 to vector<1x128xi32>
    %101 = arith.select %98, %100, %96 : vector<1x128xi1>, vector<1x128xi32>
    %102 = vector.extract_strided_slice %24 {offsets = [6, 0], sizes = [1, 128], strides = [1, 1]} : vector<8x128xf32> to vector<1x128xf32>
    %103 = arith.cmpf olt, %102, %99 : vector<1x128xf32>
    %104 = arith.select %103, %102, %99 : vector<1x128xi1>, vector<1x128xf32>
    %c6_i32 = arith.constant 6 : i32
    %105 = vector.broadcast %c6_i32 : i32 to vector<1x128xi32>
    %106 = arith.select %103, %105, %101 : vector<1x128xi1>, vector<1x128xi32>
    %107 = vector.extract_strided_slice %24 {offsets = [7, 0], sizes = [1, 128], strides = [1, 1]} : vector<8x128xf32> to vector<1x128xf32>
    %108 = arith.cmpf olt, %107, %104 : vector<1x128xf32>
    %c7_i32 = arith.constant 7 : i32
    %109 = vector.broadcast %c7_i32 : i32 to vector<1x128xi32>
    %110 = arith.select %108, %109, %106 : vector<1x128xi1>, vector<1x128xi32>
    %c0_30 = arith.constant 0 : index
    %c0_31 = arith.constant 0 : index
    %111 = vector.load %arg7[%c0_30, %c0_31] : memref<1x128xi32, #tpu.memory_space<vmem>>, vector<1x128xi32>
    tpu.vector_store %arg7[%c0_30, %c0_31], %110 {strides = array<i32>} : memref<1x128xi32, #tpu.memory_space<vmem>>, vector<1x128xi32>,
    %112 = arith.cmpi eq, %110, %3 : vector<1x128xi32>
    %113 = arith.extui %112 : vector<1x128xi1> to vector<1x128xi32>
    %114 = arith.sitofp %113 : vector<1x128xi32> to vector<1x128xf32>
    %115 = vector.shape_cast %114 : vector<1x128xf32> to vector<1x1x128xf32>
    %cst_32 = arith.constant dense<0.000000e+00> : vector<1xf32>
    %116 = vector.multi_reduction <add>, %115, %cst_32 [1, 2] : vector<1x1x128xf32> to vector<1xf32>
    %117 = vector.shape_cast %116 : vector<1xf32> to vector<1x1x1xf32>
    %118 = vector.extract %117[0, 0, 0] : f32 from vector<1x1x1xf32>
    %cst_33 = arith.constant 7.812500e-03 : f32
    %119 = arith.mulf %118, %cst_33 : f32
    %c0_34 = arith.constant 0 : index
    %120 = memref.load %arg8[%c0_34] : memref<1xf32, #tpu.memory_space<smem>>
    memref.store %119, %arg8[%c0_34] : memref<1xf32, #tpu.memory_space<smem>>
    return
  }
  func.func @transform_0(%arg0: i32) -> (i32, i32) {
    %c0_i32 = arith.constant 0 : i32
    %c0_i32_0 = arith.constant 0 : i32
    %c0_i32_1 = arith.constant 0 : i32
    return %c0_i32, %c0_i32_0 : i32, i32
  }
  func.func @transform_1(%arg0: i32) -> (i32, i32) {
    %c0_i32 = arith.constant 0 : i32
    %c0_i32_0 = arith.constant 0 : i32
    %c0_i32_1 = arith.constant 0 : i32
    return %c0_i32, %c0_i32_0 : i32, i32
  }
  func.func @transform_2(%arg0: i32) -> (i32, i32) {
    %c0_i32 = arith.constant 0 : i32
    %c0_i32_0 = arith.constant 0 : i32
    %c0_i32_1 = arith.constant 0 : i32
    return %c0_i32, %c0_i32_0 : i32, i32
  }
  func.func @transform_3(%arg0: i32) -> (i32, i32) {
    %c0_i32 = arith.constant 0 : i32
    %c0_i32_0 = arith.constant 0 : i32
    %c0_i32_1 = arith.constant 0 : i32
    return %c0_i32, %c0_i32_0 : i32, i32
  }
  func.func @transform_4(%arg0: i32) -> i32 {
    %c0_i32 = arith.constant 0 : i32
    %c0_i32_0 = arith.constant 0 : i32
    return %c0_i32 : i32
  }
  func.func @transform_5(%arg0: i32) -> (i32, i32) {
    %c0_i32 = arith.constant 0 : i32
    %c0_i32_0 = arith.constant 0 : i32
    %c0_i32_1 = arith.constant 0 : i32
    return %c0_i32, %c0_i32_0 : i32, i32
  }
  func.func @transform_6(%arg0: i32) -> (i32, i32) {
    %c0_i32 = arith.constant 0 : i32
    %c0_i32_0 = arith.constant 0 : i32
    %c0_i32_1 = arith.constant 0 : i32
    return %c0_i32, %c0_i32_0 : i32, i32
  }
  func.func @transform_7(%arg0: i32) -> i32 {
    %c0_i32 = arith.constant 0 : i32
    %c0_i32_0 = arith.constant 0 : i32
    return %c0_i32 : i32
  }
}

</mosaic_0001>

<llo_original>
// kernel: tpu_custom_call.1
$region0: #{tpu_custom_call.1}
  #allocation0 [shape = 'u32[]', space=smem, size = 0x4, offset = 0x4, fixed_abs, tag = 'smem constant byte address 0x4 - core index']
  #allocation1 [shape = 'u32[144,128]{1,0:T(1,128)}', space=vmem, size = 0x12000, scoped, tag = 'internal scratch']
  %s0 = inlined_call_operand.vmem [shape: f32[128,64], index: 0, kind: input, shape index: {}]
  %s1 = inlined_call_operand.vmem [shape: f32[1,128], index: 1, kind: input, shape index: {}]
  %s2 = inlined_call_operand.vmem [shape: f32[8,1], index: 2, kind: input, shape index: {}]
  %s3 = inlined_call_operand.vmem [shape: s32[1,128], index: 3, kind: input, shape index: {}]
  %s4 = inlined_call_operand.hbm [shape: f32[1], index: 4, kind: output, shape index: {0}]
  %s5 = inlined_call_operand.hbm [shape: f32[1,128], index: 5, kind: output, shape index: {1}]
  %s6 = inlined_call_operand.hbm [shape: s32[1,128], index: 6, kind: output, shape index: {2}]
  %s7 = inlined_call_operand.hbm [shape: f32[1], index: 7, kind: output, shape index: {3}]
  %8 = xla_tuple %s4, %s5, %s6, %s7
  %s9 = sld [smem:[#allocation0]]
  $region50: #{tpu_custom_call.1} parent=0
    _
  %s11 = ssub.s32 1, %s9
  %s12 = scalar_select 0, %s11, %s9
  $region1: #{tpu_custom_call.1} parent=0
    #allocation2 [shape = 'u8[512]{0}', space=smem, size = 0x200, scoped, tag = 'output window, operand 0, single buffered']
    #allocation3 [shape = 's32[1]{0}', space=sflag, size = 0x4, scoped, tag = 'scoped memory for tpu_custom_call.1']
    #allocation4 [shape = 's32[1]{0}', space=sflag, size = 0x4, scoped, tag = 'scoped memory for tpu_custom_call.1']
    #allocation5 [shape = 'u8[512]{0}', space=vmem, size = 0x400, scoped, tag = 'output window, operand 1, single buffered']
    #allocation6 [shape = 'u8[512]{0}', space=vmem, size = 0x400, scoped, tag = 'output window, operand 2, single buffered']
    #allocation7 [shape = 's32[1]{0}', space=sflag, size = 0x4, scoped, tag = 'scoped memory for tpu_custom_call.1']
    #allocation8 [shape = 'u8[512]{0}', space=smem, size = 0x200, scoped, tag = 'output window, operand 3, single buffered']
    #allocation9 [shape = 's32[1]{0}', space=sflag, size = 0x4, scoped, tag = 'scoped memory for tpu_custom_call.1']
    %13 = vsyncpa [#allocation4], 0
    %14 = vsyncpa [#allocation3], 0
    %15 = vsyncpa [#allocation7], 0
    %16 = vsyncpa [#allocation9], 0
    // Predicated region
    $region2: #{tpu_custom_call.1} parent=1 // pred_check
      _
    $region3: #{tpu_custom_call.1} parent=1 // pred_check_branch
      %18 = sbr.rel (0) target = $region5
    $region4: #{tpu_custom_call.1} parent=1 // pred_region
      _
    $region5: #{tpu_custom_call.1} parent=1 // pred_fallthru
      _
    // Predicated region
    $region6: #{tpu_custom_call.1} parent=1 // pred_check
      _
    $region7: #{tpu_custom_call.1} parent=1 // pred_check_branch
      %20 = sbr.rel (0) target = $region9
    $region8: #{tpu_custom_call.1} parent=1 // pred_region
      _
    $region9: #{tpu_custom_call.1} parent=1 // pred_fallthru
      _
    // Predicated region
    $region10: #{tpu_custom_call.1} parent=1 // pred_check
      _
    $region11: #{tpu_custom_call.1} parent=1 // pred_check_branch
      %22 = sbr.rel (0) target = $region13
    $region12: #{tpu_custom_call.1} parent=1 // pred_region
      _
    $region13: #{tpu_custom_call.1} parent=1 // pred_fallthru
      _
    // Predicated region
    $region14: #{tpu_custom_call.1} parent=1 // pred_check
      _
    $region15: #{tpu_custom_call.1} parent=1 // pred_check_branch
      %24 = sbr.rel (0) target = $region17
    $region16: #{tpu_custom_call.1} parent=1 // pred_region
      _
    $region17: #{tpu_custom_call.1} parent=1 // pred_fallthru
      _
    %v25 = vld [vmem:[%s0] sm:$0xff]
    %v26 = vld [vmem:[%s0 + $0x8] sm:$0xff]
    %v27 = vld [vmem:[%s0 + $0x10] sm:$0xff]
    %v28 = vld [vmem:[%s0 + $0x18] sm:$0xff]
    %v29 = vld [vmem:[%s0 + $0x20] sm:$0xff]
    %v30 = vld [vmem:[%s0 + $0x28] sm:$0xff]
    %v31 = vld [vmem:[%s0 + $0x30] sm:$0xff]
    %v32 = vld [vmem:[%s0 + $0x38] sm:$0xff]
    %v33 = vld [vmem:[%s0 + $0x40] sm:$0xff]
    %v34 = vld [vmem:[%s0 + $0x48] sm:$0xff]
    %v35 = vld [vmem:[%s0 + $0x50] sm:$0xff]
    %v36 = vld [vmem:[%s0 + $0x58] sm:$0xff]
    %v37 = vld [vmem:[%s0 + $0x60] sm:$0xff]
    %v38 = vld [vmem:[%s0 + $0x68] sm:$0xff]
    %v39 = vld [vmem:[%s0 + $0x70] sm:$0xff]
    %v40 = vld [vmem:[%s0 + $0x78] sm:$0xff]
    %v41 = vld [vmem:[%s1] sm:$0x1]
    %v42 = vld [vmem:[%s2] sm:$0xff]
    %v43 = vld [vmem:[%s3] sm:$0x1]
    %v44 = vlaneseq
    %v45 = vshrl.u32 %v44, 7
    %v46 = vlaneseq
    %v47 = vshrl.u32 %v46, 7
    %v48 = vsub.s32 0, %v47
    %v49 = vrot.slane %v43, %v48
    %vm50 = vcmp.eq.s32.totalorder %v49, %v45
    %v51 = vsel %vm50, 1, 0
    %v52 = vcvt.s32.f32 %v51
    %53 = vmatprep.subr.mxu0 0.0
    %54 = vmatpush1.msra.mxu0 %v40
    %55 = vmatprep.subr.mxu0 0.0
    %56 = vmatpush1.msra.mxu0 %v39
    %57 = vmatprep.subr.mxu0 0.0
    %58 = vmatpush1.msra.mxu0 %v38
    %59 = vmatprep.subr.mxu0 0.0
    %60 = vmatpush1.msra.mxu0 %v37
    %61 = vmatprep.subr.mxu0 0.0
    %62 = vmatpush1.msra.mxu0 %v36
    %63 = vmatprep.subr.mxu0 0.0
    %64 = vmatpush1.msra.mxu0 %v35
    %65 = vmatprep.subr.mxu0 0.0
    %66 = vmatpush1.msra.mxu0 %v34
    %67 = vmatprep.subr.mxu0 0.0
    %68 = vmatpush1.msra.mxu0 %v33
    %69 = vmatprep.subr.mxu0 0.0
    %70 = vmatpush1.msra.mxu0 %v32
    %71 = vmatprep.subr.mxu0 0.0
    %72 = vmatpush1.msra.mxu0 %v31
    %73 = vmatprep.subr.mxu0 0.0
    %74 = vmatpush1.msra.mxu0 %v30
    %75 = vmatprep.subr.mxu0 0.0
    %76 = vmatpush1.msra.mxu0 %v29
    %77 = vmatprep.subr.mxu0 0.0
    %78 = vmatpush1.msra.mxu0 %v28
    %79 = vmatprep.subr.mxu0 0.0
    %80 = vmatpush1.msra.mxu0 %v27
    %81 = vmatprep.subr.mxu0 0.0
    %82 = vmatpush1.msra.mxu0 %v26
    %83 = vmatprep.subr.mxu0 0.0
    %84 = vmatpush1.msra.mxu0 %v25
    %85 = vmatprep.subr.mxu0 0.0
    %86 = vmatpush2.msra.mxu0 0.0
    %87 = vmatprep.subr.mxu0 0.0
    %88 = vmatpush2.msra.mxu0 0.0
    %89 = vmatprep.subr.mxu0 0.0
    %90 = vmatpush2.msra.mxu0 0.0
    %91 = vmatprep.subr.mxu0 0.0
    %92 = vmatpush2.msra.mxu0 0.0
    %93 = vmatprep.subr.mxu0 0.0
    %94 = vmatpush2.msra.mxu0 0.0
    %95 = vmatprep.subr.mxu0 0.0
    %96 = vmatpush2.msra.mxu0 0.0
    %97 = vmatprep.subr.mxu0 0.0
    %98 = vmatpush2.msra.mxu0 0.0
    %99 = vmatprep.subr.mxu0 0.0
    %100 = vmatpush2.msra.mxu0 0.0
    %101 = vmatprep.subr.mxu0 0.0
    %102 = vmatpush2.msra.mxu0 0.0
    %103 = vmatprep.subr.mxu0 0.0
    %104 = vmatpush2.msra.mxu0 0.0
    %105 = vmatprep.subr.mxu0 0.0
    %106 = vmatpush2.msra.mxu0 0.0
    %107 = vmatprep.subr.mxu0 0.0
    %108 = vmatpush2.msra.mxu0 0.0
    %109 = vmatprep.subr.mxu0 0.0
    %110 = vmatpush2.msra.mxu0 0.0
    %111 = vmatprep.subr.mxu0 0.0
    %112 = vmatpush2.msra.mxu0 0.0
    %113 = vmatprep.subr.mxu0 0.0
    %114 = vmatpush2.msra.mxu0 0.0
    %115 = vmatprep.subr.mxu0 0.0
    %116 = vmatpush2.msra.mxu0 0.0
    %117 = vmatprep.mubr.f32.mxu0 0.0
    %118 = vmatmul.mubr.f32.gmra.mxu0 %v52
    %v119 = vpop.f32.mrf.mxu0
    %v120 = vadd.f32 0.0, %v119
    %v121 = vpop.f32.mrf.mxu0
    %122 = vdwg.mxu0
    %v123 = vmul.f32 %v120, 0.0625
    %v124 = vmul.f32 %v123, %v123
    %vm125 = vcmask 523264
    %v126 = vsel %vm125, %v124, 0.0
    %127 = vadd.xlane.f32.xlu0 %v126
    %v128 = vpop.xlane.xlu0 %127
    %v129 = vmul.f32 %v25, %v25
    %v130 = vmul.f32 %v26, %v26
    %v131 = vmul.f32 %v27, %v27
    %v132 = vmul.f32 %v28, %v28
    %v133 = vmul.f32 %v29, %v29
    %v134 = vmul.f32 %v30, %v30
    %v135 = vmul.f32 %v31, %v31
    %v136 = vmul.f32 %v32, %v32
    %v137 = vmul.f32 %v33, %v33
    %v138 = vmul.f32 %v34, %v34
    %v139 = vmul.f32 %v35, %v35
    %v140 = vmul.f32 %v36, %v36
    %v141 = vmul.f32 %v37, %v37
    %v142 = vmul.f32 %v38, %v38
    %v143 = vmul.f32 %v39, %v39
    %v144 = vmul.f32 %v40, %v40
    %v146 = vsel %vm125, 1.0, 0
    %v149 = vsel %vm125, %v129, 0
    %v152 = vsel %vm125, %v130, 0
    %v155 = vsel %vm125, %v131, 0
    %v158 = vsel %vm125, %v132, 0
    %v161 = vsel %vm125, %v133, 0
    %v164 = vsel %vm125, %v134, 0
    %v167 = vsel %vm125, %v135, 0
    %v170 = vsel %vm125, %v136, 0
    %v173 = vsel %vm125, %v137, 0
    %v176 = vsel %vm125, %v138, 0
    %v179 = vsel %vm125, %v139, 0
    %v182 = vsel %vm125, %v140, 0
    %v185 = vsel %vm125, %v141, 0
    %v188 = vsel %vm125, %v142, 0
    %v191 = vsel %vm125, %v143, 0
    %v194 = vsel %vm125, %v144, 0
    %196 = vmatprep.subr.mxu0 0.0
    %197 = vmatpush1.xpose.msra.mxu0 %v194
    %198 = vmatprep.subr.mxu0 0.0
    %199 = vmatpush1.xpose.msra.mxu0 %v191
    %200 = vmatprep.subr.mxu0 0.0
    %201 = vmatpush1.xpose.msra.mxu0 %v188
    %202 = vmatprep.subr.mxu0 0.0
    %203 = vmatpush1.xpose.msra.mxu0 %v185
    %204 = vmatprep.subr.mxu0 0.0
    %205 = vmatpush1.xpose.msra.mxu0 %v182
    %206 = vmatprep.subr.mxu0 0.0
    %207 = vmatpush1.xpose.msra.mxu0 %v179
    %208 = vmatprep.subr.mxu0 0.0
    %209 = vmatpush1.xpose.msra.mxu0 %v176
    %210 = vmatprep.subr.mxu0 0.0
    %211 = vmatpush1.xpose.msra.mxu0 %v173
    %212 = vmatprep.subr.mxu0 0.0
    %213 = vmatpush1.xpose.msra.mxu0 %v170
    %214 = vmatprep.subr.mxu0 0.0
    %215 = vmatpush1.xpose.msra.mxu0 %v167
    %216 = vmatprep.subr.mxu0 0.0
    %217 = vmatpush1.xpose.msra.mxu0 %v164
    %218 = vmatprep.subr.mxu0 0.0
    %219 = vmatpush1.xpose.msra.mxu0 %v161
    %220 = vmatprep.subr.mxu0 0.0
    %221 = vmatpush1.xpose.msra.mxu0 %v158
    %222 = vmatprep.subr.mxu0 0.0
    %223 = vmatpush1.xpose.msra.mxu0 %v155
    %224 = vmatprep.subr.mxu0 0.0
    %225 = vmatpush1.xpose.msra.mxu0 %v152
    %226 = vmatprep.subr.mxu0 0.0
    %227 = vmatpush1.xpose.msra.mxu0 %v149
    %228 = vmatprep.subr.mxu0 0.0
    %229 = vmatpush2.xpose.msra.mxu0 0.0
    %230 = vmatprep.subr.mxu0 0.0
    %231 = vmatpush2.xpose.msra.mxu0 0.0
    %232 = vmatprep.subr.mxu0 0.0
    %233 = vmatpush2.xpose.msra.mxu0 0.0
    %234 = vmatprep.subr.mxu0 0.0
    %235 = vmatpush2.xpose.msra.mxu0 0.0
    %236 = vmatprep.subr.mxu0 0.0
    %237 = vmatpush2.xpose.msra.mxu0 0.0
    %238 = vmatprep.subr.mxu0 0.0
    %239 = vmatpush2.xpose.msra.mxu0 0.0
    %240 = vmatprep.subr.mxu0 0.0
    %241 = vmatpush2.xpose.msra.mxu0 0.0
    %242 = vmatprep.subr.mxu0 0.0
    %243 = vmatpush2.xpose.msra.mxu0 0.0
    %244 = vmatprep.subr.mxu0 0.0
    %245 = vmatpush2.xpose.msra.mxu0 0.0
    %246 = vmatprep.subr.mxu0 0.0
    %247 = vmatpush2.xpose.msra.mxu0 0.0
    %248 = vmatprep.subr.mxu0 0.0
    %249 = vmatpush2.xpose.msra.mxu0 0.0
    %250 = vmatprep.subr.mxu0 0.0
    %251 = vmatpush2.xpose.msra.mxu0 0.0
    %252 = vmatprep.subr.mxu0 0.0
    %253 = vmatpush2.xpose.msra.mxu0 0.0
    %254 = vmatprep.subr.mxu0 0.0
    %255 = vmatpush2.xpose.msra.mxu0 0.0
    %256 = vmatprep.subr.mxu0 0.0
    %257 = vmatpush2.xpose.msra.mxu0 0.0
    %258 = vmatprep.subr.mxu0 0.0
    %259 = vmatpush2.xpose.msra.mxu0 0.0
    %260 = vmatprep.mubr.f32.mxu0 0.0
    %261 = vmatmul.mubr.f32.gmra.mxu0 %v146
    %v262 = vpop.f32.mrf.mxu0
    %v263 = vadd.f32 0.0, %v262
    %v264 = vpop.f32.mrf.mxu0
    %265 = vdwg.mxu0
    %v267 = vsel %vm125, %v123, 0
    %v270 = vsel %vm125, %v25, 0
    %v273 = vsel %vm125, %v26, 0
    %v276 = vsel %vm125, %v27, 0
    %v279 = vsel %vm125, %v28, 0
    %v282 = vsel %vm125, %v29, 0
    %v285 = vsel %vm125, %v30, 0
    %v288 = vsel %vm125, %v31, 0
    %v291 = vsel %vm125, %v32, 0
    %v294 = vsel %vm125, %v33, 0
    %v297 = vsel %vm125, %v34, 0
    %v300 = vsel %vm125, %v35, 0
    %v303 = vsel %vm125, %v36, 0
    %v306 = vsel %vm125, %v37, 0
    %v309 = vsel %vm125, %v38, 0
    %v312 = vsel %vm125, %v39, 0
    %v315 = vsel %vm125, %v40, 0
    %317 = vmatprep.subr.mxu0 0.0
    %318 = vmatpush1.xpose.msra.mxu0 %v315
    %319 = vmatprep.subr.mxu0 0.0
    %320 = vmatpush1.xpose.msra.mxu0 %v312
    %321 = vmatprep.subr.mxu0 0.0
    %322 = vmatpush1.xpose.msra.mxu0 %v309
    %323 = vmatprep.subr.mxu0 0.0
    %324 = vmatpush1.xpose.msra.mxu0 %v306
    %325 = vmatprep.subr.mxu0 0.0
    %326 = vmatpush1.xpose.msra.mxu0 %v303
    %327 = vmatprep.subr.mxu0 0.0
    %328 = vmatpush1.xpose.msra.mxu0 %v300
    %329 = vmatprep.subr.mxu0 0.0
    %330 = vmatpush1.xpose.msra.mxu0 %v297
    %331 = vmatprep.subr.mxu0 0.0
    %332 = vmatpush1.xpose.msra.mxu0 %v294
    %333 = vmatprep.subr.mxu0 0.0
    %334 = vmatpush1.xpose.msra.mxu0 %v291
    %335 = vmatprep.subr.mxu0 0.0
    %336 = vmatpush1.xpose.msra.mxu0 %v288
    %337 = vmatprep.subr.mxu0 0.0
    %338 = vmatpush1.xpose.msra.mxu0 %v285
    %339 = vmatprep.subr.mxu0 0.0
    %340 = vmatpush1.xpose.msra.mxu0 %v282
    %341 = vmatprep.subr.mxu0 0.0
    %342 = vmatpush1.xpose.msra.mxu0 %v279
    %343 = vmatprep.subr.mxu0 0.0
    %344 = vmatpush1.xpose.msra.mxu0 %v276
    %345 = vmatprep.subr.mxu0 0.0
    %346 = vmatpush1.xpose.msra.mxu0 %v273
    %347 = vmatprep.subr.mxu0 0.0
    %348 = vmatpush1.xpose.msra.mxu0 %v270
    %349 = vmatprep.subr.mxu0 0.0
    %350 = vmatpush2.xpose.msra.mxu0 0.0
    %351 = vmatprep.subr.mxu0 0.0
    %352 = vmatpush2.xpose.msra.mxu0 0.0
    %353 = vmatprep.subr.mxu0 0.0
    %354 = vmatpush2.xpose.msra.mxu0 0.0
    %355 = vmatprep.subr.mxu0 0.0
    %356 = vmatpush2.xpose.msra.mxu0 0.0
    %357 = vmatprep.subr.mxu0 0.0
    %358 = vmatpush2.xpose.msra.mxu0 0.0
    %359 = vmatprep.subr.mxu0 0.0
    %360 = vmatpush2.xpose.msra.mxu0 0.0
    %361 = vmatprep.subr.mxu0 0.0
    %362 = vmatpush2.xpose.msra.mxu0 0.0
    %363 = vmatprep.subr.mxu0 0.0
    %364 = vmatpush2.xpose.msra.mxu0 0.0
    %365 = vmatprep.subr.mxu0 0.0
    %366 = vmatpush2.xpose.msra.mxu0 0.0
    %367 = vmatprep.subr.mxu0 0.0
    %368 = vmatpush2.xpose.msra.mxu0 0.0
    %369 = vmatprep.subr.mxu0 0.0
    %370 = vmatpush2.xpose.msra.mxu0 0.0
    %371 = vmatprep.subr.mxu0 0.0
    %372 = vmatpush2.xpose.msra.mxu0 0.0
    %373 = vmatprep.subr.mxu0 0.0
    %374 = vmatpush2.xpose.msra.mxu0 0.0
    %375 = vmatprep.subr.mxu0 0.0
    %376 = vmatpush2.xpose.msra.mxu0 0.0
    %377 = vmatprep.subr.mxu0 0.0
    %378 = vmatpush2.xpose.msra.mxu0 0.0
    %379 = vmatprep.subr.mxu0 0.0
    %380 = vmatpush2.xpose.msra.mxu0 0.0
    %381 = vmatprep.mubr.f32.mxu0 0.0
    %382 = vmatmul.mubr.f32.gmra.mxu0 %v267
    %v383 = vpop.f32.mrf.mxu0
    %v384 = vadd.f32 0.0, %v383
    %v385 = vpop.f32.mrf.mxu0
    %386 = vdwg.mxu0
    %v387 = vlaneseq
    %v388 = vshrl.u32 %v387, 7
    %v389 = vsub.s32 0, %v388
    %v390 = vrot.slane %v263, %v389
    %v391 = vadd.f32 %v128, %v390
    %v392 = vmul.f32 %v384, 2.0
    %v393 = vsub.f32 %v391, %v392
    %v394 = vmul.f32 %v52, %v393
    %v395 = vrot.slane %v394, 4
    %v396 = vadd.f32 %v394, %v395
    %v397 = vrot.slane %v396, 2
    %v398 = vadd.f32 %v396, %v397
    %v399 = vrot.slane %v398, 1
    %v400 = vadd.f32 %v398, %v399
    %vm401 = vcmask 1040384
    %v402 = vsel %vm401, %v400, 0.0
    %403 = vadd.xlane.f32.xlu0 %v402
    %v404 = vpop.xlane.xlu0 %403
    %v405 = vrot.slane %v404, 4
    %v406 = vadd.f32 %v404, %v405
    %v407 = vrot.slane %v406, 2
    %v408 = vadd.f32 %v406, %v407
    %v409 = vrot.slane %v408, 1
    %v410 = vadd.f32 %v408, %v409
    %s411 = vtos %v410
    %v412 = vstv %s411
    %v413 = vrcp.pop 127.0
    %v414 = vmul.f32 %v412, %v413
    %v415 = vmul.f32 %v414, 2.0
    %v416 = vmul.f32 %v415, %v414
    %v417 = vrcp.pop %v416
    %v418 = vmul.f32 -1.0, %v417
    %v419 = vmul.f32 %v418, %v400
    %v420 = vsub.f32 %v419, 1.0
    %v421 = vmul.f32 %v420, 1.442695
    %v422 = vpow.pop %v421
    %424 = vset.pattern.permute.xlu0 0
    %425 = vperm.xlu0 %424, %v42
    %v426 = vpop.permute.xlu0 %425
    %v429 = vlaneseq
    %v430 = vshrl.u32 %v429, 7
    %v431 = vsub.s32 0, %v430
    %v432 = vrot.slane %v41, %v431
    %vm434 = vcmp.eq.f32.partialorder %v426, %v432
    %v435 = vsel %vm434, 1, 0
    %v436 = vcvt.s32.f32 %v435
    %v437 = vsub.f32 1.0, %v436
    %v438 = vmul.f32 %v418, %v393
    %v439 = vmul.f32 %v438, 1.442695
    %v440 = vpow.pop %v439
    %v441 = vmul.f32 %v437, %v440
    %v442 = vrot.slane %v441, 4
    %v443 = vadd.f32 %v441, %v442
    %v444 = vrot.slane %v443, 2
    %v445 = vadd.f32 %v443, %v444
    %v446 = vrot.slane %v445, 1
    %v447 = vadd.f32 %v445, %v446
    %v448 = vadd.f32 %v447, 1e-08
    %v449 = vrcp.pop %v448
    %v450 = vmul.f32 %v422, %v449
    %v451 = vadd.f32 %v450, 1e-08
    %v452 = vlog2.pop %v451
    %v453 = vmul.f32 %v452, 0.6931472
    %v454 = vsub.f32 0.0, %v453
    %v455 = vmax.f32 %v454, 0.0
    %456 = vst [vmem:[#allocation5] sm:$0x1] %v455
    %v457 = vsel %vm401, %v455, 0.0
    %458 = vadd.xlane.f32.xlu0 %v457
    %v459 = vpop.xlane.xlu0 %458
    %v460 = vrot.slane %v459, 4
    %v461 = vadd.f32 %v459, %v460
    %v462 = vrot.slane %v461, 2
    %v463 = vadd.f32 %v461, %v462
    %v464 = vrot.slane %v463, 1
    %v465 = vadd.f32 %v463, %v464
    %s466 = vtos %v465
    %s467 = smul.f32 %s466, 0.0078125
    %s468 = scalar_lea.smem [#allocation2], 0
    %469 = sst [smem:[%s468]] %s467
    %v471 = vrot.slane %v393, 7
    %vm473 = vcmp.lt.f32.partialorder %v393, %v471
    %v474 = vsel %vm473, %v393, %v471
    %v475 = vsel %vm473, 1, 0
    %v477 = vrot.slane %v474, 7
    %vm479 = vcmp.lt.f32.partialorder %v393, %v477
    %v480 = vsel %vm479, %v393, %v477
    %v481 = vrot.slane %v475, 7
    %v482 = vsel %vm479, 2, %v481
    %v484 = vrot.slane %v480, 7
    %vm486 = vcmp.lt.f32.partialorder %v393, %v484
    %v487 = vsel %vm486, %v393, %v484
    %v488 = vrot.slane %v482, 7
    %v489 = vsel %vm486, 3, %v488
    %v491 = vrot.slane %v487, 7
    %vm493 = vcmp.lt.f32.partialorder %v393, %v491
    %v494 = vsel %vm493, %v393, %v491
    %v495 = vrot.slane %v489, 7
    %v496 = vsel %vm493, 4, %v495
    %v498 = vrot.slane %v494, 7
    %vm500 = vcmp.lt.f32.partialorder %v393, %v498
    %v501 = vsel %vm500, %v393, %v498
    %v502 = vrot.slane %v496, 7
    %v503 = vsel %vm500, 5, %v502
    %v505 = vrot.slane %v501, 7
    %vm507 = vcmp.lt.f32.partialorder %v393, %v505
    %v508 = vsel %vm507, %v393, %v505
    %v509 = vrot.slane %v503, 7
    %v510 = vsel %vm507, 6, %v509
    %v512 = vrot.slane %v508, 7
    %vm514 = vcmp.lt.f32.partialorder %v393, %v512
    %v515 = vrot.slane %v510, 7
    %v516 = vsel %vm514, 7, %v515
    %517 = vst [vmem:[#allocation6 - $0x7] sm:$0x80] %v516
    %vm518 = vcmp.eq.s32.totalorder %v516, %v49
    %v519 = vsel %vm518, 1, 0
    %v520 = vcvt.s32.f32 %v519
    %v522 = vrot.slane %v520, 7
    %v524 = vsel %vm401, %v522, 0.0
    %525 = vadd.xlane.f32.xlu0 %v524
    %v526 = vpop.xlane.xlu0 %525
    %v527 = vrot.slane %v526, 4
    %v528 = vadd.f32 %v526, %v527
    %v529 = vrot.slane %v528, 2
    %v530 = vadd.f32 %v528, %v529
    %v531 = vrot.slane %v530, 1
    %v532 = vadd.f32 %v530, %v531
    %s533 = vtos %v532
    %s534 = smul.f32 %s533, 0.0078125
    %s535 = scalar_lea.smem [#allocation8], 0
    %536 = sst [smem:[%s535]] %s534
    // Predicated region
    $region18: #{tpu_custom_call.1} parent=1 // pred_check
      _
    $region19: #{tpu_custom_call.1} parent=1 // pred_check_branch
      %538 = sbr.rel (0) target = $region21
    $region20: #{tpu_custom_call.1} parent=1 // pred_region
      %s540 = ssub.s32 16, 16
      %541 = vsyncadd [#allocation4], %s540
      %544 = dma.smem_to_hbm [#allocation2], 16, %s4, [#allocation4]
    $region21: #{tpu_custom_call.1} parent=1 // pred_fallthru
      _
    // Predicated region
    $region22: #{tpu_custom_call.1} parent=1 // pred_check
      _
    $region23: #{tpu_custom_call.1} parent=1 // pred_check_branch
      %546 = sbr.rel (0) target = $region25
    $region24: #{tpu_custom_call.1} parent=1 // pred_region
      %s548 = ssub.s32 16, 16
      %549 = vsyncadd [#allocation3], %s548
      %s551 = sshll.u32 [#allocation5], 4
      %s552 = int_to_ptr.vmem [resolvable:$true] %s551
      %554 = dma.vmem_to_hbm [thread:$0]  %s552, 16, %s5, [#allocation3]
    $region25: #{tpu_custom_call.1} parent=1 // pred_fallthru
      _
    // Predicated region
    $region26: #{tpu_custom_call.1} parent=1 // pred_check
      _
    $region27: #{tpu_custom_call.1} parent=1 // pred_check_branch
      %556 = sbr.rel (0) target = $region29
    $region28: #{tpu_custom_call.1} parent=1 // pred_region
      %s558 = ssub.s32 16, 16
      %559 = vsyncadd [#allocation7], %s558
      %s561 = sshll.u32 [#allocation6], 4
      %s562 = int_to_ptr.vmem [resolvable:$true] %s561
      %564 = dma.vmem_to_hbm [thread:$0]  %s562, 16, %s6, [#allocation7]
    $region29: #{tpu_custom_call.1} parent=1 // pred_fallthru
      _
    // Predicated region
    $region30: #{tpu_custom_call.1} parent=1 // pred_check
      _
    $region31: #{tpu_custom_call.1} parent=1 // pred_check_branch
      %566 = sbr.rel (0) target = $region33
    $region32: #{tpu_custom_call.1} parent=1 // pred_region
      %s568 = ssub.s32 16, 16
      %569 = vsyncadd [#allocation9], %s568
      %572 = dma.smem_to_hbm [#allocation8], 16, %s7, [#allocation9]
    $region33: #{tpu_custom_call.1} parent=1 // pred_fallthru
      _
    // Predicated region
    $region34: #{tpu_custom_call.1} parent=1 // pred_check
      _
    $region35: #{tpu_custom_call.1} parent=1 // pred_check_branch
      %574 = sbr.rel (0) target = $region37
    $region36: #{tpu_custom_call.1} parent=1 // pred_region
      %575 = dma.done [#allocation4], 16
    $region37: #{tpu_custom_call.1} parent=1 // pred_fallthru
      _
    // Predicated region
    $region38: #{tpu_custom_call.1} parent=1 // pred_check
      _
    $region39: #{tpu_custom_call.1} parent=1 // pred_check_branch
      %577 = sbr.rel (0) target = $region41
    $region40: #{tpu_custom_call.1} parent=1 // pred_region
      %578 = dma.done [#allocation3], 16
    $region41: #{tpu_custom_call.1} parent=1 // pred_fallthru
      _
    // Predicated region
    $region42: #{tpu_custom_call.1} parent=1 // pred_check
      _
    $region43: #{tpu_custom_call.1} parent=1 // pred_check_branch
      %580 = sbr.rel (0) target = $region45
    $region44: #{tpu_custom_call.1} parent=1 // pred_region
      %581 = dma.done [#allocation7], 16
    $region45: #{tpu_custom_call.1} parent=1 // pred_fallthru
      _
    // Predicated region
    $region46: #{tpu_custom_call.1} parent=1 // pred_check
      _
    $region47: #{tpu_custom_call.1} parent=1 // pred_check_branch
      %583 = sbr.rel (0) target = $region49
    $region48: #{tpu_custom_call.1} parent=1 // pred_region
      %584 = dma.done [#allocation9], 16
    $region49: #{tpu_custom_call.1} parent=1 // pred_fallthru
      _
    %585 = sfence
    %586 = vsyncpa [#allocation3], 1
    %587 = vsyncpa [#allocation7], 1
    %588 = vsyncpa [#allocation4], 1
    %589 = vsyncpa [#allocation9], 1

</llo_original>
